<compile_context>
chip_gen: v7x
topology: tpu7x:2x2x1
jax: 0.10.0
libtpu: 0.0.40
codegen_flags: <defaults>
</compile_context>

<pallas_src>
import functools

import numpy as np
import jax
import jax.numpy as jnp
from jax.experimental import pallas as pl
from jax.experimental.pallas import tpu as pltpu


def _r8(n):
    return -(-n // 8) * 8


# ----------------------------------------------------------------------------
# Pallas kernel: whole forward pass.
# ----------------------------------------------------------------------------
def dfr_kernel(x_ref, prev_ref, w_ref, out_ref, med_ref, *,
               T, B8, NI, NH, NF, W,
               mask_off, mhh_off, w1_off, w2_off, b2_off):
    # x_ref:    (T*B8, NI)   time-major input (rows t*B8:(t+1)*B8 == timestep t)
    # prev_ref: (B8, W)      initial reservoir state (zero-padded cols/rows)
    # w_ref:    (rows, W)    packed weight slab (sublane-aligned sections)
    # out_ref:  (B8, 2)      fc2 output
    # med_ref:  (B8, NF)     fc1 output (pre-ReLU), second module return value
    x = x_ref[...]

    # --- FakeQuantize (MovingAverageMinMaxObserver, first call) -------------
    # Zero-padded batch rows do not perturb the observer: min is clamped to
    # <= 0 and max to >= 0 regardless.
    qmin, qmax = 0.0, 255.0
    eps = jnp.float32(1.1920929e-07)             # torch.finfo(float32).eps
    min_val = jnp.minimum(jnp.min(x, keepdims=True), 0.0)     # (1, 1)
    max_val = jnp.maximum(jnp.max(x, keepdims=True), 0.0)     # (1, 1)
    scale = jnp.maximum((max_val - min_val) / (qmax - qmin), eps)
    inv_scale = 1.0 / scale                      # exact reciprocal (see review)
    zp = jnp.clip(qmin - jnp.round(min_val * inv_scale), qmin, qmax)
    xq = (jnp.clip(jnp.round(x * inv_scale) + zp, qmin, qmax) - zp) * scale

    # --- hoisted input projection: ONE MXU matmul for all T timesteps -------
    mask = w_ref[mask_off:mask_off + NI, :]                   # (NI, W)
    vec_x_all = jnp.dot(xq, mask,
                        preferred_element_type=jnp.float32)   # (T*B8, W)

    # --- recurrence (serial; only prev@mhh + tanh on the critical path) -----
    # TODO(synk): could pin mhh in the MXU weight registers across the unroll
    # (pltpu.matmul_push_rhs / matmul_acc_lhs / matmul_pop); kept as jnp.dot
    # because the explicit accumulate/pop semantics at these tiny (<< MXU
    # tile) shapes cannot be verified here.
    mhh = w_ref[mhh_off:mhh_off + W, :]                       # (W, W)
    prev = prev_ref[...]                                      # (B8, W)
    for t in range(T):                                        # static unroll
        vx = vec_x_all[t * B8:(t + 1) * B8, :]                # aligned sublane tile
        prev = jnp.tanh(vx + jnp.dot(prev, mhh,
                                     preferred_element_type=jnp.float32))

    # --- heads: med = fc1(cell_out); output = fc2(relu(med)) ----------------
    w1 = w_ref[w1_off:w1_off + W, :]                          # (W, W)
    med = jnp.dot(prev, w1, preferred_element_type=jnp.float32)      # (B8, W)
    w2 = w_ref[w2_off:w2_off + W, :]                          # (W, W)
    b2 = w_ref[b2_off:b2_off + 1, :]                          # (1, W)
    out = jnp.dot(jnp.maximum(med, 0.0), w2,
                  preferred_element_type=jnp.float32) + b2    # (B8, W)

    out_ref[...] = out[:, :2]
    med_ref[...] = med[:, :NF]


# ----------------------------------------------------------------------------
# One-time parameter packing (hoisted out of the per-call path).
# ----------------------------------------------------------------------------
def pack_params(mask, mask_hh, fc1_w, fc2_w, fc2_b):
    """Pack all constant operands into one sublane-aligned, lane-padded slab."""
    NI, NH = mask.shape
    NF = fc1_w.shape[0]
    W = max(NH, NF, 2)
    mask_off = 0
    mhh_off = _r8(NI)
    w1_off = mhh_off + _r8(W)
    w2_off = w1_off + _r8(W)
    b2_off = w2_off + _r8(W)
    rows = b2_off + 8

    slab = jnp.zeros((rows, W), jnp.float32)
    slab = slab.at[mask_off:mask_off + NI, :NH].set(mask)
    slab = slab.at[mhh_off:mhh_off + NH, :NH].set(mask_hh)
    slab = slab.at[w1_off:w1_off + NH, :NF].set(fc1_w.T)
    slab = slab.at[w2_off:w2_off + NF, :2].set(fc2_w.T)
    slab = slab.at[b2_off, :2].set(fc2_b)

    meta = dict(NI=NI, NH=NH, NF=NF, W=W,
                mask_off=mask_off, mhh_off=mhh_off, w1_off=w1_off,
                w2_off=w2_off, b2_off=b2_off)
    return slab, meta


# ----------------------------------------------------------------------------
# Wrapper factory.
# ----------------------------------------------------------------------------
def make_dfr_forward(T, B, meta, slab_rows):
    NI, NH, NF, W = meta["NI"], meta["NH"], meta["NF"], meta["W"]
    B8 = max(_r8(B), 8)          # pad batch to a whole sublane tile

    kernel = functools.partial(
        dfr_kernel, T=T, B8=B8, NI=NI, NH=NH, NF=NF, W=W,
        mask_off=meta["mask_off"], mhh_off=meta["mhh_off"],
        w1_off=meta["w1_off"], w2_off=meta["w2_off"], b2_off=meta["b2_off"])

    flops = (2 * T * B8 * NI * W          # input projection
             + 2 * T * B8 * W * W         # recurrence
             + 2 * B8 * W * W             # fc1
             + 2 * B8 * W * W)            # fc2 (padded)
    bytes_accessed = 4 * (T * B8 * NI + B8 * W + slab_rows * W + B8 * (NF + 2))
    cost = pl.CostEstimate(flops=flops, transcendentals=T * B8 * W,
                           bytes_accessed=bytes_accessed)

    vmem = pl.BlockSpec(memory_space=pltpu.MemorySpace.VMEM)
    call = pl.pallas_call(
        kernel,
        out_shape=(jax.ShapeDtypeStruct((B8, 2), jnp.float32),
                   jax.ShapeDtypeStruct((B8, NF), jnp.float32)),
        in_specs=[vmem, vmem, vmem],
        out_specs=(vmem, vmem),
        cost_estimate=cost,
    )

    def forward(batch_seq_x, prev_out, slab):
        # Time-major + zero-pad batch to B8. Padded rows stay exactly zero
        # through the recurrence (0@mask + 0@mhh -> tanh(0) = 0) and are
        # sliced off below; they are never fed back as state.
        x_tb = jnp.transpose(batch_seq_x, (1, 0, 2))            # (T, B, NI)
        x_tb = jnp.pad(x_tb, ((0, 0), (0, B8 - B), (0, 0))).reshape(T * B8, NI)
        prev = jnp.pad(prev_out, ((0, B8 - B), (0, W - NH)))    # (B8, W)
        out, med = call(x_tb, prev, slab)
        return out[:B], med[:B]

    return jax.jit(forward)


# ----------------------------------------------------------------------------
# Pure-JAX reference (mirrors the PyTorch forward) for verification.
# ----------------------------------------------------------------------------
def _fake_quantize_ref(x, qmin=0.0, qmax=255.0):
    eps = jnp.float32(1.1920929e-07)
    min_val = jnp.minimum(jnp.min(x), 0.0)
    max_val = jnp.maximum(jnp.max(x), 0.0)
    scale = jnp.maximum((max_val - min_val) / (qmax - qmin), eps)
    inv_scale = 1.0 / scale
    zp = jnp.clip(qmin - jnp.round(min_val * inv_scale), qmin, qmax)
    return (jnp.clip(jnp.round(x * inv_scale) + zp, qmin, qmax) - zp) * scale


def dfr_forward_ref(batch_seq_x, prev_out, mask, mask_hh, fc1_w, fc2_w, fc2_b):
    B, T, NI = batch_seq_x.shape
    x = _fake_quantize_ref(batch_seq_x)
    prev = prev_out
    cell_out = prev
    for t in range(T):
        cell_out = jnp.tanh(x[:, t, :] @ mask + prev @ mask_hh)
        prev = cell_out
    med = cell_out @ fc1_w.T
    out = jnp.maximum(med, 0.0) @ fc2_w.T + fc2_b
    return out, med


# ----------------------------------------------------------------------------
# Deterministic parameter init (mirrors the module's __init__ conventions).
# ----------------------------------------------------------------------------
def init_params(key, n_input=4, n_hidden=10, n_fc=20):
    k1, k2, k3, k4, k5, k6 = jax.random.split(key, 6)

    # DFRCell.mask : uniform(-1, 1)
    mask = jax.random.uniform(k1, (n_input, n_hidden), jnp.float32, -1.0, 1.0)

    # DFRCell.mask_hh : uniform(-0.5, 0.5), 40% zeroed, spectral radius -> 0.2
    w2 = jax.random.uniform(k2, (n_hidden, n_hidden), jnp.float32, -0.5, 0.5)
    drop = jax.random.uniform(k3, (n_hidden, n_hidden)) < 0.4
    w2 = jnp.where(drop, 0.0, w2)
    radius = float(np.max(np.abs(np.linalg.eigvals(np.asarray(w2)))))
    mask_hh = w2 * (0.2 / radius)

    # fc1 : QLinear(n_hidden, n_fc, bias=False) -> float weight (n_fc, n_hidden)
    b1 = 1.0 / np.sqrt(n_hidden)
    fc1_w = jax.random.uniform(k4, (n_fc, n_hidden), jnp.float32, -b1, b1)

    # fc2 : Linear(n_fc, 2) with bias
    b2 = 1.0 / np.sqrt(n_fc)
    fc2_w = jax.random.uniform(k5, (2, n_fc), jnp.float32, -b2, b2)
    fc2_b = jax.random.uniform(k6, (2,), jnp.float32, -b2, b2)

    return mask, mask_hh, fc1_w, fc2_w, fc2_b


if __name__ == "__main__":
    key = jax.random.PRNGKey(0)
    B, T, NI, NH, NF = 2, 6, 4, 10, 20

    kp, kx = jax.random.split(key, 2)
    mask, mask_hh, fc1_w, fc2_w, fc2_b = init_params(kp, NI, NH, NF)

    batch_seq_x = jax.random.normal(kx, (B, T, NI), jnp.float32)
    prev_out = jnp.zeros((B, NH), jnp.float32)

    # one-time packing (out of the per-call path)
    slab, meta = pack_params(mask, mask_hh, fc1_w, fc2_w, fc2_b)
    forward = make_dfr_forward(T, B, meta, slab.shape[0])

    out, med = forward(batch_seq_x, prev_out, slab)
    jax.block_until_ready((out, med))

    out_r, med_r = dfr_forward_ref(batch_seq_x, prev_out, mask, mask_hh,
                                   fc1_w, fc2_w, fc2_b)
    np.testing.assert_allclose(np.asarray(out), np.asarray(out_r),
                               rtol=1e-5, atol=1e-4)
    np.testing.assert_allclose(np.asarray(med), np.asarray(med_r),
                               rtol=1e-5, atol=1e-4)

    print("KERNEL_OK")
</pallas_src>

<mosaic_0001>
module attributes {stable_mosaic.version = 11 : i64} {
  func.func @dfr_kernel(%arg0: memref<48x4xf32, #tpu.memory_space<vmem>>, %arg1: memref<8x20xf32, #tpu.memory_space<vmem>>, %arg2: memref<88x20xf32, #tpu.memory_space<vmem>>, %arg3: memref<8x2xf32, #tpu.memory_space<vmem>>, %arg4: memref<8x20xf32, #tpu.memory_space<vmem>>) attributes {dimension_semantics = [], scalar_prefetch = 0 : i64, scratch_operands = 0 : i64, tpu.core_type = #tpu.core_type<tc>} {
    %c0 = arith.constant 0 : index
    %c0_0 = arith.constant 0 : index
    %0 = vector.load %arg0[%c0, %c0_0] : memref<48x4xf32, #tpu.memory_space<vmem>>, vector<48x4xf32>
    %1 = vector.shape_cast %0 : vector<48x4xf32> to vector<1x48x4xf32>
    %cst = arith.constant dense<0x7F800000> : vector<1xf32>
    %2 = vector.multi_reduction <minimumf>, %1, %cst [1, 2] : vector<1x48x4xf32> to vector<1xf32>
    %3 = vector.shape_cast %2 : vector<1xf32> to vector<1x1x1xf32>
    %4 = vector.extract %3[0, 0, 0] : f32 from vector<1x1x1xf32>
    %5 = vector.broadcast %4 : f32 to vector<1x1xf32>
    %cst_1 = arith.constant 0.000000e+00 : f32
    %6 = vector.broadcast %cst_1 : f32 to vector<1x1xf32>
    %7 = arith.minimumf %5, %6 : vector<1x1xf32>
    %8 = vector.shape_cast %0 : vector<48x4xf32> to vector<1x48x4xf32>
    %cst_2 = arith.constant dense<0xFF800000> : vector<1xf32>
    %9 = vector.multi_reduction <maximumf>, %8, %cst_2 [1, 2] : vector<1x48x4xf32> to vector<1xf32>
    %10 = vector.shape_cast %9 : vector<1xf32> to vector<1x1x1xf32>
    %11 = vector.extract %10[0, 0, 0] : f32 from vector<1x1x1xf32>
    %12 = vector.broadcast %11 : f32 to vector<1x1xf32>
    %cst_3 = arith.constant 0.000000e+00 : f32
    %13 = vector.broadcast %cst_3 : f32 to vector<1x1xf32>
    %14 = arith.maximumf %12, %13 : vector<1x1xf32>
    %15 = arith.subf %14, %7 : vector<1x1xf32>
    %cst_4 = arith.constant 2.550000e+02 : f32
    %16 = vector.broadcast %cst_4 : f32 to vector<1x1xf32>
    %17 = arith.divf %15, %16 : vector<1x1xf32>
    %cst_5 = arith.constant 1.1920929E-7 : f32
    %18 = vector.broadcast %cst_5 : f32 to vector<1x1xf32>
    %19 = arith.maximumf %17, %18 : vector<1x1xf32>
    %cst_6 = arith.constant 1.000000e+00 : f32
    %20 = vector.broadcast %cst_6 : f32 to vector<1x1xf32>
    %21 = arith.divf %20, %19 : vector<1x1xf32>
    %22 = arith.mulf %7, %21 : vector<1x1xf32>
    %23 = math.roundeven %22 : vector<1x1xf32>
    %cst_7 = arith.constant 0.000000e+00 : f32
    %24 = vector.broadcast %cst_7 : f32 to vector<1x1xf32>
    %25 = arith.subf %24, %23 : vector<1x1xf32>
    %cst_8 = arith.constant 0.000000e+00 : f32
    %cst_9 = arith.constant 2.550000e+02 : f32
    %26 = vector.broadcast %cst_8 : f32 to vector<1x1xf32>
    %27 = arith.maximumf %26, %25 : vector<1x1xf32>
    %28 = vector.broadcast %cst_9 : f32 to vector<1x1xf32>
    %29 = arith.minimumf %28, %27 : vector<1x1xf32>
    %30 = vector.broadcast %21 : vector<1x1xf32> to vector<48x4xf32>
    %31 = arith.mulf %0, %30 : vector<48x4xf32>
    %32 = math.roundeven %31 : vector<48x4xf32>
    %33 = vector.broadcast %29 : vector<1x1xf32> to vector<48x4xf32>
    %34 = arith.addf %32, %33 : vector<48x4xf32>
    %cst_10 = arith.constant 0.000000e+00 : f32
    %cst_11 = arith.constant 2.550000e+02 : f32
    %35 = vector.broadcast %cst_10 : f32 to vector<48x4xf32>
    %36 = arith.maximumf %35, %34 : vector<48x4xf32>
    %37 = vector.broadcast %cst_11 : f32 to vector<48x4xf32>
    %38 = arith.minimumf %37, %36 : vector<48x4xf32>
    %39 = vector.broadcast %29 : vector<1x1xf32> to vector<48x4xf32>
    %40 = arith.subf %38, %39 : vector<48x4xf32>
    %41 = vector.broadcast %19 : vector<1x1xf32> to vector<48x4xf32>
    %42 = arith.mulf %40, %41 : vector<48x4xf32>
    %c0_12 = arith.constant 0 : index
    %c0_13 = arith.constant 0 : index
    %43 = vector.load %arg2[%c0_12, %c0_13] : memref<88x20xf32, #tpu.memory_space<vmem>>, vector<4x20xf32>
    %cst_14 = arith.constant dense<0.000000e+00> : vector<48x20xf32>
    %44 = tpu.matmul %42, %43, %cst_14 {dimension_numbers = #tpu.dot_dimension_numbers<[1], [0], [0], [1], [0, 0, 1, 1], [], []>} : vector<48x4xf32>, vector<4x20xf32>, vector<48x20xf32> -> vector<48x20xf32>
    %c8 = arith.constant 8 : index
    %c0_15 = arith.constant 0 : index
    %45 = vector.load %arg2[%c8, %c0_15] : memref<88x20xf32, #tpu.memory_space<vmem>>, vector<20x20xf32>
    %c0_16 = arith.constant 0 : index
    %c0_17 = arith.constant 0 : index
    %46 = vector.load %arg1[%c0_16, %c0_17] : memref<8x20xf32, #tpu.memory_space<vmem>>, vector<8x20xf32>
    %47 = vector.extract_strided_slice %44 {offsets = [0, 0], sizes = [8, 20], strides = [1, 1]} : vector<48x20xf32> to vector<8x20xf32>
    %cst_18 = arith.constant dense<0.000000e+00> : vector<8x20xf32>
    %48 = tpu.matmul %46, %45, %cst_18 {dimension_numbers = #tpu.dot_dimension_numbers<[1], [0], [0], [1], [0, 0, 1, 1], [], []>} : vector<8x20xf32>, vector<20x20xf32>, vector<8x20xf32> -> vector<8x20xf32>
    %49 = arith.addf %47, %48 : vector<8x20xf32>
    %50 = math.tanh %49 : vector<8x20xf32>
    %51 = vector.extract_strided_slice %44 {offsets = [8, 0], sizes = [8, 20], strides = [1, 1]} : vector<48x20xf32> to vector<8x20xf32>
    %cst_19 = arith.constant dense<0.000000e+00> : vector<8x20xf32>
    %52 = tpu.matmul %50, %45, %cst_19 {dimension_numbers = #tpu.dot_dimension_numbers<[1], [0], [0], [1], [0, 0, 1, 1], [], []>} : vector<8x20xf32>, vector<20x20xf32>, vector<8x20xf32> -> vector<8x20xf32>
    %53 = arith.addf %51, %52 : vector<8x20xf32>
    %54 = math.tanh %53 : vector<8x20xf32>
    %55 = vector.extract_strided_slice %44 {offsets = [16, 0], sizes = [8, 20], strides = [1, 1]} : vector<48x20xf32> to vector<8x20xf32>
    %cst_20 = arith.constant dense<0.000000e+00> : vector<8x20xf32>
    %56 = tpu.matmul %54, %45, %cst_20 {dimension_numbers = #tpu.dot_dimension_numbers<[1], [0], [0], [1], [0, 0, 1, 1], [], []>} : vector<8x20xf32>, vector<20x20xf32>, vector<8x20xf32> -> vector<8x20xf32>
    %57 = arith.addf %55, %56 : vector<8x20xf32>
    %58 = math.tanh %57 : vector<8x20xf32>
    %59 = vector.extract_strided_slice %44 {offsets = [24, 0], sizes = [8, 20], strides = [1, 1]} : vector<48x20xf32> to vector<8x20xf32>
    %cst_21 = arith.constant dense<0.000000e+00> : vector<8x20xf32>
    %60 = tpu.matmul %58, %45, %cst_21 {dimension_numbers = #tpu.dot_dimension_numbers<[1], [0], [0], [1], [0, 0, 1, 1], [], []>} : vector<8x20xf32>, vector<20x20xf32>, vector<8x20xf32> -> vector<8x20xf32>
    %61 = arith.addf %59, %60 : vector<8x20xf32>
    %62 = math.tanh %61 : vector<8x20xf32>
    %63 = vector.extract_strided_slice %44 {offsets = [32, 0], sizes = [8, 20], strides = [1, 1]} : vector<48x20xf32> to vector<8x20xf32>
    %cst_22 = arith.constant dense<0.000000e+00> : vector<8x20xf32>
    %64 = tpu.matmul %62, %45, %cst_22 {dimension_numbers = #tpu.dot_dimension_numbers<[1], [0], [0], [1], [0, 0, 1, 1], [], []>} : vector<8x20xf32>, vector<20x20xf32>, vector<8x20xf32> -> vector<8x20xf32>
    %65 = arith.addf %63, %64 : vector<8x20xf32>
    %66 = math.tanh %65 : vector<8x20xf32>
    %67 = vector.extract_strided_slice %44 {offsets = [40, 0], sizes = [8, 20], strides = [1, 1]} : vector<48x20xf32> to vector<8x20xf32>
    %cst_23 = arith.constant dense<0.000000e+00> : vector<8x20xf32>
    %68 = tpu.matmul %66, %45, %cst_23 {dimension_numbers = #tpu.dot_dimension_numbers<[1], [0], [0], [1], [0, 0, 1, 1], [], []>} : vector<8x20xf32>, vector<20x20xf32>, vector<8x20xf32> -> vector<8x20xf32>
    %69 = arith.addf %67, %68 : vector<8x20xf32>
    %70 = math.tanh %69 : vector<8x20xf32>
    %c32 = arith.constant 32 : index
    %c0_24 = arith.constant 0 : index
    %71 = vector.load %arg2[%c32, %c0_24] : memref<88x20xf32, #tpu.memory_space<vmem>>, vector<20x20xf32>
    %cst_25 = arith.constant dense<0.000000e+00> : vector<8x20xf32>
    %72 = tpu.matmul %70, %71, %cst_25 {dimension_numbers = #tpu.dot_dimension_numbers<[1], [0], [0], [1], [0, 0, 1, 1], [], []>} : vector<8x20xf32>, vector<20x20xf32>, vector<8x20xf32> -> vector<8x20xf32>
    %c56 = arith.constant 56 : index
    %c0_26 = arith.constant 0 : index
    %73 = vector.load %arg2[%c56, %c0_26] : memref<88x20xf32, #tpu.memory_space<vmem>>, vector<20x20xf32>
    %c80 = arith.constant 80 : index
    %c0_27 = arith.constant 0 : index
    %74 = vector.load %arg2[%c80, %c0_27] : memref<88x20xf32, #tpu.memory_space<vmem>>, vector<1x20xf32>
    %cst_28 = arith.constant 0.000000e+00 : f32
    %75 = vector.broadcast %cst_28 : f32 to vector<8x20xf32>
    %76 = arith.maximumf %72, %75 : vector<8x20xf32>
    %cst_29 = arith.constant dense<0.000000e+00> : vector<8x20xf32>
    %77 = tpu.matmul %76, %73, %cst_29 {dimension_numbers = #tpu.dot_dimension_numbers<[1], [0], [0], [1], [0, 0, 1, 1], [], []>} : vector<8x20xf32>, vector<20x20xf32>, vector<8x20xf32> -> vector<8x20xf32>
    %78 = vector.broadcast %74 : vector<1x20xf32> to vector<8x20xf32>
    %79 = arith.addf %77, %78 : vector<8x20xf32>
    %80 = vector.extract_strided_slice %79 {offsets = [0, 0], sizes = [8, 2], strides = [1, 1]} : vector<8x20xf32> to vector<8x2xf32>
    %c0_30 = arith.constant 0 : index
    %c0_31 = arith.constant 0 : index
    %81 = vector.load %arg3[%c0_30, %c0_31] : memref<8x2xf32, #tpu.memory_space<vmem>>, vector<8x2xf32>
    tpu.vector_store %arg3[%c0_30, %c0_31], %80 {strides = array<i32>} : memref<8x2xf32, #tpu.memory_space<vmem>>, vector<8x2xf32>,
    %c0_32 = arith.constant 0 : index
    %c0_33 = arith.constant 0 : index
    %82 = vector.load %arg4[%c0_32, %c0_33] : memref<8x20xf32, #tpu.memory_space<vmem>>, vector<8x20xf32>
    tpu.vector_store %arg4[%c0_32, %c0_33], %72 {strides = array<i32>} : memref<8x20xf32, #tpu.memory_space<vmem>>, vector<8x20xf32>,
    return
  }
}

</mosaic_0001>

<llo_original>
// kernel: forward.1
$region0: #{forward.1}
  #allocation0 [shape = 'u32[]', space=smem, size = 0x4, offset = 0x4, fixed_abs, tag = 'smem constant byte address 0x4 - core index']
  #allocation1 [shape = 'u32[144,128]{1,0:T(1,128)}', space=vmem, size = 0x12000, scoped, tag = 'internal scratch']
  %s0 = inlined_call_operand.vmem [shape: f32[48,4], index: 0, kind: input, shape index: {}]
  %s1 = inlined_call_operand.vmem [shape: f32[8,20], index: 1, kind: input, shape index: {}]
  %s2 = inlined_call_operand.vmem [shape: f32[88,20], index: 2, kind: input, shape index: {}]
  %s3 = inlined_call_operand.vmem [shape: f32[8,2], index: 3, kind: output, shape index: {0}]
  %s4 = inlined_call_operand.vmem [shape: f32[8,20], index: 4, kind: output, shape index: {1}]
  %5 = xla_tuple %s3, %s4
  %s6 = sld [smem:[#allocation0]]
  $region30: #{forward.1} parent=0
    _
  %s8 = ssub.s32 1, %s6
  %s9 = scalar_select 0, %s8, %s6
  // Predicated region
  $region2: #{forward.1} parent=0 // pred_check
    _
  $region3: #{forward.1} parent=0 // pred_check_branch
    %11 = sbr.rel (0) target = $region5
  $region4: #{forward.1} parent=0 // pred_region
    _
  $region5: #{forward.1} parent=0 // pred_fallthru
    _
  // Predicated region
  $region6: #{forward.1} parent=0 // pred_check
    _
  $region7: #{forward.1} parent=0 // pred_check_branch
    %13 = sbr.rel (0) target = $region9
  $region8: #{forward.1} parent=0 // pred_region
    _
  $region9: #{forward.1} parent=0 // pred_fallthru
    _
  // Predicated region
  $region10: #{forward.1} parent=0 // pred_check
    _
  $region11: #{forward.1} parent=0 // pred_check_branch
    %15 = sbr.rel (0) target = $region13
  $region12: #{forward.1} parent=0 // pred_region
    _
  $region13: #{forward.1} parent=0 // pred_fallthru
    _
  %v16 = vld [vmem:[%s0] sm:$0xff]
  %v17 = vld [vmem:[%s0 + $0x8] sm:$0xff]
  %v18 = vld [vmem:[%s0 + $0x10] sm:$0xff]
  %v19 = vld [vmem:[%s0 + $0x18] sm:$0xff]
  %v20 = vld [vmem:[%s0 + $0x20] sm:$0xff]
  %v21 = vld [vmem:[%s0 + $0x28] sm:$0xff]
  %vm22 = vcmask 31744
  %v23 = vsel %vm22, %v16, inf
  %v24 = vsel %vm22, %v17, inf
  %v25 = vsel %vm22, %v18, inf
  %v26 = vsel %vm22, %v19, inf
  %v27 = vsel %vm22, %v20, inf
  %v28 = vmin.f32 %v23, %v27
  %v29 = vsel %vm22, %v21, inf
  %v30 = vmin.f32 %v24, %v29
  %v31 = vmin.f32 %v28, %v30
  %v32 = vmin.f32 %v25, %v26
  %v33 = vmin.f32 %v31, %v32
  %34 = vmin.xlane.f32.xlu0 %v33
  %v35 = vpop.xlane.xlu0 %34
  %v36 = vrot.slane %v35, 4
  %v37 = vmin.f32 %v35, %v36
  %v38 = vrot.slane %v37, 2
  %v39 = vmin.f32 %v37, %v38
  %v40 = vrot.slane %v39, 1
  %v41 = vmin.f32 %v39, %v40
  %s42 = vtos %v41
  %v43 = vstv %s42
  %v44 = vmin.f32 %v43, 0.0
  %v45 = vsel %vm22, %v16, -inf
  %v46 = vsel %vm22, %v17, -inf
  %v47 = vsel %vm22, %v18, -inf
  %v48 = vsel %vm22, %v19, -inf
  %v49 = vsel %vm22, %v20, -inf
  %v50 = vmax.f32 %v45, %v49
  %v51 = vsel %vm22, %v21, -inf
  %v52 = vmax.f32 %v46, %v51
  %v53 = vmax.f32 %v50, %v52
  %v54 = vmax.f32 %v47, %v48
  %v55 = vmax.f32 %v53, %v54
  %56 = vmax.xlane.f32.xlu0 %v55
  %v57 = vpop.xlane.xlu0 %56
  %v58 = vrot.slane %v57, 4
  %v59 = vmax.f32 %v57, %v58
  %v60 = vrot.slane %v59, 2
  %v61 = vmax.f32 %v59, %v60
  %v62 = vrot.slane %v61, 1
  %v63 = vmax.f32 %v61, %v62
  %s64 = vtos %v63
  %v65 = vstv %s64
  %v66 = vmax.f32 %v65, 0.0
  %v67 = vsub.f32 %v66, %v44
  %v68 = vrcp.pop 255.0
  %v69 = vmul.f32 %v67, %v68
  %v70 = vmax.f32 %v69, 1.1920929e-07
  %v71 = vrcp.pop %v70
  %v72 = vmul.f32 1.0, %v71
  %v73 = vmul.f32 %v44, %v72
  %v74 = vround.ne.pseudo %v73
  %v75 = vsub.f32 0.0, %v74
  %v76 = vmax.f32 %v75, 0.0
  %v77 = vmin.f32 %v76, 255.0
  %v78 = vmul.f32 %v16, %v72
  %v79 = vmul.f32 %v17, %v72
  %v80 = vmul.f32 %v18, %v72
  %v81 = vmul.f32 %v19, %v72
  %v82 = vmul.f32 %v20, %v72
  %v83 = vmul.f32 %v21, %v72
  %v84 = vround.ne.pseudo %v78
  %v85 = vround.ne.pseudo %v79
  %v86 = vround.ne.pseudo %v80
  %v87 = vround.ne.pseudo %v81
  %v88 = vround.ne.pseudo %v82
  %v89 = vround.ne.pseudo %v83
  %v90 = vadd.f32 %v84, %v77
  %v91 = vadd.f32 %v85, %v77
  %v92 = vadd.f32 %v86, %v77
  %v93 = vadd.f32 %v87, %v77
  %v94 = vadd.f32 %v88, %v77
  %v95 = vadd.f32 %v89, %v77
  %v96 = vmax.f32 %v90, 0.0
  %v97 = vmax.f32 %v91, 0.0
  %v98 = vmax.f32 %v92, 0.0
  %v99 = vmax.f32 %v93, 0.0
  %v100 = vmax.f32 %v94, 0.0
  %v101 = vmax.f32 %v95, 0.0
  %v102 = vmin.f32 %v96, 255.0
  %v103 = vmin.f32 %v97, 255.0
  %v104 = vmin.f32 %v98, 255.0
  %v105 = vmin.f32 %v99, 255.0
  %v106 = vmin.f32 %v100, 255.0
  %v107 = vmin.f32 %v101, 255.0
  %v108 = vsub.f32 %v102, %v77
  %v109 = vsub.f32 %v103, %v77
  %v110 = vsub.f32 %v104, %v77
  %v111 = vsub.f32 %v105, %v77
  %v112 = vsub.f32 %v106, %v77
  %v113 = vsub.f32 %v107, %v77
  %v114 = vmul.f32 %v108, %v70
  %v115 = vmul.f32 %v109, %v70
  %v116 = vmul.f32 %v110, %v70
  %v117 = vmul.f32 %v111, %v70
  %v118 = vmul.f32 %v112, %v70
  %v119 = vmul.f32 %v113, %v70
  %v120 = vld [vmem:[%s2] sm:$0xf]
  %v122 = vsel %vm22, %v114, 0
  %v125 = vsel %vm22, %v115, 0
  %v128 = vsel %vm22, %v116, 0
  %v131 = vsel %vm22, %v117, 0
  %v134 = vsel %vm22, %v118, 0
  %v137 = vsel %vm22, %v119, 0
  %vm139 = vcmask 1043456
  %v141 = vsel %vm139, %v120, 0
  %143 = vmatprep.subr.mxu0 0.0
  %144 = vmatpush1.msra.mxu0 %v141
  %145 = vmatprep.subr.mxu0 0.0
  %146 = vmatpush1.msra.mxu0 0.0
  %147 = vmatprep.subr.mxu0 0.0
  %148 = vmatpush1.msra.mxu0 0.0
  %149 = vmatprep.subr.mxu0 0.0
  %150 = vmatpush1.msra.mxu0 0.0
  %151 = vmatprep.subr.mxu0 0.0
  %152 = vmatpush1.msra.mxu0 0.0
  %153 = vmatprep.subr.mxu0 0.0
  %154 = vmatpush1.msra.mxu0 0.0
  %155 = vmatprep.subr.mxu0 0.0
  %156 = vmatpush1.msra.mxu0 0.0
  %157 = vmatprep.subr.mxu0 0.0
  %158 = vmatpush1.msra.mxu0 0.0
  %159 = vmatprep.subr.mxu0 0.0
  %160 = vmatpush1.msra.mxu0 0.0
  %161 = vmatprep.subr.mxu0 0.0
  %162 = vmatpush1.msra.mxu0 0.0
  %163 = vmatprep.subr.mxu0 0.0
  %164 = vmatpush1.msra.mxu0 0.0
  %165 = vmatprep.subr.mxu0 0.0
  %166 = vmatpush1.msra.mxu0 0.0
  %167 = vmatprep.subr.mxu0 0.0
  %168 = vmatpush1.msra.mxu0 0.0
  %169 = vmatprep.subr.mxu0 0.0
  %170 = vmatpush1.msra.mxu0 0.0
  %171 = vmatprep.subr.mxu0 0.0
  %172 = vmatpush1.msra.mxu0 0.0
  %173 = vmatprep.subr.mxu0 0.0
  %174 = vmatpush1.msra.mxu0 0.0
  %175 = vmatprep.subr.mxu0 0.0
  %176 = vmatpush1.msra.mxu0 0.0
  %177 = vmatprep.subr.mxu0 0.0
  %178 = vmatpush1.msra.mxu0 0.0
  %179 = vmatprep.subr.mxu0 0.0
  %180 = vmatpush1.msra.mxu0 0.0
  %181 = vmatprep.subr.mxu0 0.0
  %182 = vmatpush1.msra.mxu0 0.0
  %183 = vmatprep.subr.mxu0 0.0
  %184 = vmatpush1.msra.mxu0 0.0
  %185 = vmatprep.subr.mxu0 0.0
  %186 = vmatpush1.msra.mxu0 0.0
  %187 = vmatprep.subr.mxu0 0.0
  %188 = vmatpush1.msra.mxu0 0.0
  %189 = vmatprep.subr.mxu0 0.0
  %190 = vmatpush1.msra.mxu0 0.0
  %191 = vmatprep.subr.mxu0 0.0
  %192 = vmatpush1.msra.mxu0 0.0
  %193 = vmatprep.subr.mxu0 0.0
  %194 = vmatpush1.msra.mxu0 0.0
  %195 = vmatprep.subr.mxu0 0.0
  %196 = vmatpush1.msra.mxu0 0.0
  %197 = vmatprep.subr.mxu0 0.0
  %198 = vmatpush1.msra.mxu0 0.0
  %199 = vmatprep.subr.mxu0 0.0
  %200 = vmatpush1.msra.mxu0 0.0
  %201 = vmatprep.subr.mxu0 0.0
  %202 = vmatpush1.msra.mxu0 0.0
  %203 = vmatprep.subr.mxu0 0.0
  %204 = vmatpush1.msra.mxu0 0.0
  %205 = vmatprep.subr.mxu0 0.0
  %206 = vmatpush1.msra.mxu0 0.0
  %207 = vmatprep.mubr.f32.mxu0 0.0
  %208 = vmatmul.mubr.f32.gmra.mrb[0].mxu0 %v122
  %v209 = vpop.f32.mrb[0].mxu0
  %v210 = vadd.f32 0.0, %v209
  %v211 = vpop.f32.mrb[0].mxu0
  %212 = vmatprep.mubr.f32.mxu0 0.0
  %213 = vmatmul.mubr.f32.gmra.mrb[0].mxu0 %v125
  %v214 = vpop.f32.mrb[0].mxu0
  %v215 = vadd.f32 0.0, %v214
  %v216 = vpop.f32.mrb[0].mxu0
  %217 = vmatprep.mubr.f32.mxu0 0.0
  %218 = vmatmul.mubr.f32.gmra.mrb[0].mxu0 %v128
  %v219 = vpop.f32.mrb[0].mxu0
  %v220 = vadd.f32 0.0, %v219
  %v221 = vpop.f32.mrb[0].mxu0
  %222 = vmatprep.mubr.f32.mxu0 0.0
  %223 = vmatmul.mubr.f32.gmra.mrb[0].mxu0 %v131
  %v224 = vpop.f32.mrb[0].mxu0
  %v225 = vadd.f32 0.0, %v224
  %v226 = vpop.f32.mrb[0].mxu0
  %227 = vmatprep.mubr.f32.mxu0 0.0
  %228 = vmatmul.mubr.f32.gmra.mrb[0].mxu0 %v134
  %v229 = vpop.f32.mrb[0].mxu0
  %v230 = vadd.f32 0.0, %v229
  %v231 = vpop.f32.mrb[0].mxu0
  %232 = vmatprep.mubr.f32.mxu0 0.0
  %233 = vmatmul.mubr.f32.gmra.mrb[0].mxu0 %v137
  %v234 = vpop.f32.mrb[0].mxu0
  %v235 = vadd.f32 0.0, %v234
  %v236 = vpop.f32.mrb[0].mxu0
  %237 = vdwg.mxu0
  %v238 = vld [vmem:[%s2 + $0x8] sm:$0xff]
  %v239 = vld [vmem:[%s2 + $0x10] sm:$0xff]
  %v240 = vld [vmem:[%s2 + $0x18] sm:$0xf]
  %v241 = vld [vmem:[%s1] sm:$0xff]
  %vm242 = vcmask 162816
  %v244 = vsel %vm242, %v241, 0
  %v247 = vsel %vm139, %v240, 0
  %249 = vmatprep.subr.mxu0 0.0
  %250 = vmatpush1.msra.mxu0 %v238
  %251 = vmatprep.subr.mxu0 0.0
  %252 = vmatpush1.msra.mxu0 %v239
  %253 = vmatprep.subr.mxu0 0.0
  %254 = vmatpush1.msra.mxu0 %v247
  %255 = vmatprep.subr.mxu0 0.0
  %256 = vmatpush1.msra.mxu0 0.0
  %257 = vmatprep.subr.mxu0 0.0
  %258 = vmatpush1.msra.mxu0 0.0
  %259 = vmatprep.subr.mxu0 0.0
  %260 = vmatpush1.msra.mxu0 0.0
  %261 = vmatprep.subr.mxu0 0.0
  %262 = vmatpush1.msra.mxu0 0.0
  %263 = vmatprep.subr.mxu0 0.0
  %264 = vmatpush1.msra.mxu0 0.0
  %265 = vmatprep.subr.mxu0 0.0
  %266 = vmatpush1.msra.mxu0 0.0
  %267 = vmatprep.subr.mxu0 0.0
  %268 = vmatpush1.msra.mxu0 0.0
  %269 = vmatprep.subr.mxu0 0.0
  %270 = vmatpush1.msra.mxu0 0.0
  %271 = vmatprep.subr.mxu0 0.0
  %272 = vmatpush1.msra.mxu0 0.0
  %273 = vmatprep.subr.mxu0 0.0
  %274 = vmatpush1.msra.mxu0 0.0
  %275 = vmatprep.subr.mxu0 0.0
  %276 = vmatpush1.msra.mxu0 0.0
  %277 = vmatprep.subr.mxu0 0.0
  %278 = vmatpush1.msra.mxu0 0.0
  %279 = vmatprep.subr.mxu0 0.0
  %280 = vmatpush1.msra.mxu0 0.0
  %281 = vmatprep.subr.mxu0 0.0
  %282 = vmatpush1.msra.mxu0 0.0
  %283 = vmatprep.subr.mxu0 0.0
  %284 = vmatpush1.msra.mxu0 0.0
  %285 = vmatprep.subr.mxu0 0.0
  %286 = vmatpush1.msra.mxu0 0.0
  %287 = vmatprep.subr.mxu0 0.0
  %288 = vmatpush1.msra.mxu0 0.0
  %289 = vmatprep.subr.mxu0 0.0
  %290 = vmatpush1.msra.mxu0 0.0
  %291 = vmatprep.subr.mxu0 0.0
  %292 = vmatpush1.msra.mxu0 0.0
  %293 = vmatprep.subr.mxu0 0.0
  %294 = vmatpush1.msra.mxu0 0.0
  %295 = vmatprep.subr.mxu0 0.0
  %296 = vmatpush1.msra.mxu0 0.0
  %297 = vmatprep.subr.mxu0 0.0
  %298 = vmatpush1.msra.mxu0 0.0
  %299 = vmatprep.subr.mxu0 0.0
  %300 = vmatpush1.msra.mxu0 0.0
  %301 = vmatprep.subr.mxu0 0.0
  %302 = vmatpush1.msra.mxu0 0.0
  %303 = vmatprep.subr.mxu0 0.0
  %304 = vmatpush1.msra.mxu0 0.0
  %305 = vmatprep.subr.mxu0 0.0
  %306 = vmatpush1.msra.mxu0 0.0
  %307 = vmatprep.subr.mxu0 0.0
  %308 = vmatpush1.msra.mxu0 0.0
  %309 = vmatprep.subr.mxu0 0.0
  %310 = vmatpush1.msra.mxu0 0.0
  %311 = vmatprep.subr.mxu0 0.0
  %312 = vmatpush1.msra.mxu0 0.0
  %313 = vmatprep.mubr.f32.mxu0 0.0
  %314 = vmatmul.mubr.f32.gmra.mrb[0].mxu0 %v244
  %v315 = vpop.f32.mrb[0].mxu0
  %v316 = vadd.f32 0.0, %v315
  %v317 = vpop.f32.mrb[0].mxu0
  %318 = vdwg.mxu0
  %v319 = vadd.f32 %v210, %v316
  %v320 = vtanh.pop %v319
  %v322 = vsel %vm242, %v320, 0
  %324 = vmatprep.subr.mxu0 0.0
  %325 = vmatpush1.msra.mxu0 %v238
  %326 = vmatprep.subr.mxu0 0.0
  %327 = vmatpush1.msra.mxu0 %v239
  %328 = vmatprep.subr.mxu0 0.0
  %329 = vmatpush1.msra.mxu0 %v247
  %330 = vmatprep.subr.mxu0 0.0
  %331 = vmatpush1.msra.mxu0 0.0
  %332 = vmatprep.subr.mxu0 0.0
  %333 = vmatpush1.msra.mxu0 0.0
  %334 = vmatprep.subr.mxu0 0.0
  %335 = vmatpush1.msra.mxu0 0.0
  %336 = vmatprep.subr.mxu0 0.0
  %337 = vmatpush1.msra.mxu0 0.0
  %338 = vmatprep.subr.mxu0 0.0
  %339 = vmatpush1.msra.mxu0 0.0
  %340 = vmatprep.subr.mxu0 0.0
  %341 = vmatpush1.msra.mxu0 0.0
  %342 = vmatprep.subr.mxu0 0.0
  %343 = vmatpush1.msra.mxu0 0.0
  %344 = vmatprep.subr.mxu0 0.0
  %345 = vmatpush1.msra.mxu0 0.0
  %346 = vmatprep.subr.mxu0 0.0
  %347 = vmatpush1.msra.mxu0 0.0
  %348 = vmatprep.subr.mxu0 0.0
  %349 = vmatpush1.msra.mxu0 0.0
  %350 = vmatprep.subr.mxu0 0.0
  %351 = vmatpush1.msra.mxu0 0.0
  %352 = vmatprep.subr.mxu0 0.0
  %353 = vmatpush1.msra.mxu0 0.0
  %354 = vmatprep.subr.mxu0 0.0
  %355 = vmatpush1.msra.mxu0 0.0
  %356 = vmatprep.subr.mxu0 0.0
  %357 = vmatpush1.msra.mxu0 0.0
  %358 = vmatprep.subr.mxu0 0.0
  %359 = vmatpush1.msra.mxu0 0.0
  %360 = vmatprep.subr.mxu0 0.0
  %361 = vmatpush1.msra.mxu0 0.0
  %362 = vmatprep.subr.mxu0 0.0
  %363 = vmatpush1.msra.mxu0 0.0
  %364 = vmatprep.subr.mxu0 0.0
  %365 = vmatpush1.msra.mxu0 0.0
  %366 = vmatprep.subr.mxu0 0.0
  %367 = vmatpush1.msra.mxu0 0.0
  %368 = vmatprep.subr.mxu0 0.0
  %369 = vmatpush1.msra.mxu0 0.0
  %370 = vmatprep.subr.mxu0 0.0
  %371 = vmatpush1.msra.mxu0 0.0
  %372 = vmatprep.subr.mxu0 0.0
  %373 = vmatpush1.msra.mxu0 0.0
  %374 = vmatprep.subr.mxu0 0.0
  %375 = vmatpush1.msra.mxu0 0.0
  %376 = vmatprep.subr.mxu0 0.0
  %377 = vmatpush1.msra.mxu0 0.0
  %378 = vmatprep.subr.mxu0 0.0
  %379 = vmatpush1.msra.mxu0 0.0
  %380 = vmatprep.subr.mxu0 0.0
  %381 = vmatpush1.msra.mxu0 0.0
  %382 = vmatprep.subr.mxu0 0.0
  %383 = vmatpush1.msra.mxu0 0.0
  %384 = vmatprep.subr.mxu0 0.0
  %385 = vmatpush1.msra.mxu0 0.0
  %386 = vmatprep.subr.mxu0 0.0
  %387 = vmatpush1.msra.mxu0 0.0
  %388 = vmatprep.mubr.f32.mxu0 0.0
  %389 = vmatmul.mubr.f32.gmra.mrb[0].mxu0 %v322
  %v390 = vpop.f32.mrb[0].mxu0
  %v391 = vadd.f32 0.0, %v390
  %v392 = vpop.f32.mrb[0].mxu0
  %393 = vdwg.mxu0
  %v394 = vadd.f32 %v215, %v391
  %v395 = vtanh.pop %v394
  %v397 = vsel %vm242, %v395, 0
  %399 = vmatprep.subr.mxu0 0.0
  %400 = vmatpush1.msra.mxu0 %v238
  %401 = vmatprep.subr.mxu0 0.0
  %402 = vmatpush1.msra.mxu0 %v239
  %403 = vmatprep.subr.mxu0 0.0
  %404 = vmatpush1.msra.mxu0 %v247
  %405 = vmatprep.subr.mxu0 0.0
  %406 = vmatpush1.msra.mxu0 0.0
  %407 = vmatprep.subr.mxu0 0.0
  %408 = vmatpush1.msra.mxu0 0.0
  %409 = vmatprep.subr.mxu0 0.0
  %410 = vmatpush1.msra.mxu0 0.0
  %411 = vmatprep.subr.mxu0 0.0
  %412 = vmatpush1.msra.mxu0 0.0
  %413 = vmatprep.subr.mxu0 0.0
  %414 = vmatpush1.msra.mxu0 0.0
  %415 = vmatprep.subr.mxu0 0.0
  %416 = vmatpush1.msra.mxu0 0.0
  %417 = vmatprep.subr.mxu0 0.0
  %418 = vmatpush1.msra.mxu0 0.0
  %419 = vmatprep.subr.mxu0 0.0
  %420 = vmatpush1.msra.mxu0 0.0
  %421 = vmatprep.subr.mxu0 0.0
  %422 = vmatpush1.msra.mxu0 0.0
  %423 = vmatprep.subr.mxu0 0.0
  %424 = vmatpush1.msra.mxu0 0.0
  %425 = vmatprep.subr.mxu0 0.0
  %426 = vmatpush1.msra.mxu0 0.0
  %427 = vmatprep.subr.mxu0 0.0
  %428 = vmatpush1.msra.mxu0 0.0
  %429 = vmatprep.subr.mxu0 0.0
  %430 = vmatpush1.msra.mxu0 0.0
  %431 = vmatprep.subr.mxu0 0.0
  %432 = vmatpush1.msra.mxu0 0.0
  %433 = vmatprep.subr.mxu0 0.0
  %434 = vmatpush1.msra.mxu0 0.0
  %435 = vmatprep.subr.mxu0 0.0
  %436 = vmatpush1.msra.mxu0 0.0
  %437 = vmatprep.subr.mxu0 0.0
  %438 = vmatpush1.msra.mxu0 0.0
  %439 = vmatprep.subr.mxu0 0.0
  %440 = vmatpush1.msra.mxu0 0.0
  %441 = vmatprep.subr.mxu0 0.0
  %442 = vmatpush1.msra.mxu0 0.0
  %443 = vmatprep.subr.mxu0 0.0
  %444 = vmatpush1.msra.mxu0 0.0
  %445 = vmatprep.subr.mxu0 0.0
  %446 = vmatpush1.msra.mxu0 0.0
  %447 = vmatprep.subr.mxu0 0.0
  %448 = vmatpush1.msra.mxu0 0.0
  %449 = vmatprep.subr.mxu0 0.0
  %450 = vmatpush1.msra.mxu0 0.0
  %451 = vmatprep.subr.mxu0 0.0
  %452 = vmatpush1.msra.mxu0 0.0
  %453 = vmatprep.subr.mxu0 0.0
  %454 = vmatpush1.msra.mxu0 0.0
  %455 = vmatprep.subr.mxu0 0.0
  %456 = vmatpush1.msra.mxu0 0.0
  %457 = vmatprep.subr.mxu0 0.0
  %458 = vmatpush1.msra.mxu0 0.0
  %459 = vmatprep.subr.mxu0 0.0
  %460 = vmatpush1.msra.mxu0 0.0
  %461 = vmatprep.subr.mxu0 0.0
  %462 = vmatpush1.msra.mxu0 0.0
  %463 = vmatprep.mubr.f32.mxu0 0.0
  %464 = vmatmul.mubr.f32.gmra.mrb[0].mxu0 %v397
  %v465 = vpop.f32.mrb[0].mxu0
  %v466 = vadd.f32 0.0, %v465
  %v467 = vpop.f32.mrb[0].mxu0
  %468 = vdwg.mxu0
  %v469 = vadd.f32 %v220, %v466
  %v470 = vtanh.pop %v469
  %v472 = vsel %vm242, %v470, 0
  %474 = vmatprep.subr.mxu0 0.0
  %475 = vmatpush1.msra.mxu0 %v238
  %476 = vmatprep.subr.mxu0 0.0
  %477 = vmatpush1.msra.mxu0 %v239
  %478 = vmatprep.subr.mxu0 0.0
  %479 = vmatpush1.msra.mxu0 %v247
  %480 = vmatprep.subr.mxu0 0.0
  %481 = vmatpush1.msra.mxu0 0.0
  %482 = vmatprep.subr.mxu0 0.0
  %483 = vmatpush1.msra.mxu0 0.0
  %484 = vmatprep.subr.mxu0 0.0
  %485 = vmatpush1.msra.mxu0 0.0
  %486 = vmatprep.subr.mxu0 0.0
  %487 = vmatpush1.msra.mxu0 0.0
  %488 = vmatprep.subr.mxu0 0.0
  %489 = vmatpush1.msra.mxu0 0.0
  %490 = vmatprep.subr.mxu0 0.0
  %491 = vmatpush1.msra.mxu0 0.0
  %492 = vmatprep.subr.mxu0 0.0
  %493 = vmatpush1.msra.mxu0 0.0
  %494 = vmatprep.subr.mxu0 0.0
  %495 = vmatpush1.msra.mxu0 0.0
  %496 = vmatprep.subr.mxu0 0.0
  %497 = vmatpush1.msra.mxu0 0.0
  %498 = vmatprep.subr.mxu0 0.0
  %499 = vmatpush1.msra.mxu0 0.0
  %500 = vmatprep.subr.mxu0 0.0
  %501 = vmatpush1.msra.mxu0 0.0
  %502 = vmatprep.subr.mxu0 0.0
  %503 = vmatpush1.msra.mxu0 0.0
  %504 = vmatprep.subr.mxu0 0.0
  %505 = vmatpush1.msra.mxu0 0.0
  %506 = vmatprep.subr.mxu0 0.0
  %507 = vmatpush1.msra.mxu0 0.0
  %508 = vmatprep.subr.mxu0 0.0
  %509 = vmatpush1.msra.mxu0 0.0
  %510 = vmatprep.subr.mxu0 0.0
  %511 = vmatpush1.msra.mxu0 0.0
  %512 = vmatprep.subr.mxu0 0.0
  %513 = vmatpush1.msra.mxu0 0.0
  %514 = vmatprep.subr.mxu0 0.0
  %515 = vmatpush1.msra.mxu0 0.0
  %516 = vmatprep.subr.mxu0 0.0
  %517 = vmatpush1.msra.mxu0 0.0
  %518 = vmatprep.subr.mxu0 0.0
  %519 = vmatpush1.msra.mxu0 0.0
  %520 = vmatprep.subr.mxu0 0.0
  %521 = vmatpush1.msra.mxu0 0.0
  %522 = vmatprep.subr.mxu0 0.0
  %523 = vmatpush1.msra.mxu0 0.0
  %524 = vmatprep.subr.mxu0 0.0
  %525 = vmatpush1.msra.mxu0 0.0
  %526 = vmatprep.subr.mxu0 0.0
  %527 = vmatpush1.msra.mxu0 0.0
  %528 = vmatprep.subr.mxu0 0.0
  %529 = vmatpush1.msra.mxu0 0.0
  %530 = vmatprep.subr.mxu0 0.0
  %531 = vmatpush1.msra.mxu0 0.0
  %532 = vmatprep.subr.mxu0 0.0
  %533 = vmatpush1.msra.mxu0 0.0
  %534 = vmatprep.subr.mxu0 0.0
  %535 = vmatpush1.msra.mxu0 0.0
  %536 = vmatprep.subr.mxu0 0.0
  %537 = vmatpush1.msra.mxu0 0.0
  %538 = vmatprep.mubr.f32.mxu0 0.0
  %539 = vmatmul.mubr.f32.gmra.mrb[0].mxu0 %v472
  %v540 = vpop.f32.mrb[0].mxu0
  %v541 = vadd.f32 0.0, %v540
  %v542 = vpop.f32.mrb[0].mxu0
  %543 = vdwg.mxu0
  %v544 = vadd.f32 %v225, %v541
  %v545 = vtanh.pop %v544
  %v547 = vsel %vm242, %v545, 0
  %549 = vmatprep.subr.mxu0 0.0
  %550 = vmatpush1.msra.mxu0 %v238
  %551 = vmatprep.subr.mxu0 0.0
  %552 = vmatpush1.msra.mxu0 %v239
  %553 = vmatprep.subr.mxu0 0.0
  %554 = vmatpush1.msra.mxu0 %v247
  %555 = vmatprep.subr.mxu0 0.0
  %556 = vmatpush1.msra.mxu0 0.0
  %557 = vmatprep.subr.mxu0 0.0
  %558 = vmatpush1.msra.mxu0 0.0
  %559 = vmatprep.subr.mxu0 0.0
  %560 = vmatpush1.msra.mxu0 0.0
  %561 = vmatprep.subr.mxu0 0.0
  %562 = vmatpush1.msra.mxu0 0.0
  %563 = vmatprep.subr.mxu0 0.0
  %564 = vmatpush1.msra.mxu0 0.0
  %565 = vmatprep.subr.mxu0 0.0
  %566 = vmatpush1.msra.mxu0 0.0
  %567 = vmatprep.subr.mxu0 0.0
  %568 = vmatpush1.msra.mxu0 0.0
  %569 = vmatprep.subr.mxu0 0.0
  %570 = vmatpush1.msra.mxu0 0.0
  %571 = vmatprep.subr.mxu0 0.0
  %572 = vmatpush1.msra.mxu0 0.0
  %573 = vmatprep.subr.mxu0 0.0
  %574 = vmatpush1.msra.mxu0 0.0
  %575 = vmatprep.subr.mxu0 0.0
  %576 = vmatpush1.msra.mxu0 0.0
  %577 = vmatprep.subr.mxu0 0.0
  %578 = vmatpush1.msra.mxu0 0.0
  %579 = vmatprep.subr.mxu0 0.0
  %580 = vmatpush1.msra.mxu0 0.0
  %581 = vmatprep.subr.mxu0 0.0
  %582 = vmatpush1.msra.mxu0 0.0
  %583 = vmatprep.subr.mxu0 0.0
  %584 = vmatpush1.msra.mxu0 0.0
  %585 = vmatprep.subr.mxu0 0.0
  %586 = vmatpush1.msra.mxu0 0.0
  %587 = vmatprep.subr.mxu0 0.0
  %588 = vmatpush1.msra.mxu0 0.0
  %589 = vmatprep.subr.mxu0 0.0
  %590 = vmatpush1.msra.mxu0 0.0
  %591 = vmatprep.subr.mxu0 0.0
  %592 = vmatpush1.msra.mxu0 0.0
  %593 = vmatprep.subr.mxu0 0.0
  %594 = vmatpush1.msra.mxu0 0.0
  %595 = vmatprep.subr.mxu0 0.0
  %596 = vmatpush1.msra.mxu0 0.0
  %597 = vmatprep.subr.mxu0 0.0
  %598 = vmatpush1.msra.mxu0 0.0
  %599 = vmatprep.subr.mxu0 0.0
  %600 = vmatpush1.msra.mxu0 0.0
  %601 = vmatprep.subr.mxu0 0.0
  %602 = vmatpush1.msra.mxu0 0.0
  %603 = vmatprep.subr.mxu0 0.0
  %604 = vmatpush1.msra.mxu0 0.0
  %605 = vmatprep.subr.mxu0 0.0
  %606 = vmatpush1.msra.mxu0 0.0
  %607 = vmatprep.subr.mxu0 0.0
  %608 = vmatpush1.msra.mxu0 0.0
  %609 = vmatprep.subr.mxu0 0.0
  %610 = vmatpush1.msra.mxu0 0.0
  %611 = vmatprep.subr.mxu0 0.0
  %612 = vmatpush1.msra.mxu0 0.0
  %613 = vmatprep.mubr.f32.mxu0 0.0
  %614 = vmatmul.mubr.f32.gmra.mrb[0].mxu0 %v547
  %v615 = vpop.f32.mrb[0].mxu0
  %v616 = vadd.f32 0.0, %v615
  %v617 = vpop.f32.mrb[0].mxu0
  %618 = vdwg.mxu0
  %v619 = vadd.f32 %v230, %v616
  %v620 = vtanh.pop %v619
  %v622 = vsel %vm242, %v620, 0
  %624 = vmatprep.subr.mxu0 0.0
  %625 = vmatpush1.msra.mxu0 %v238
  %626 = vmatprep.subr.mxu0 0.0
  %627 = vmatpush1.msra.mxu0 %v239
  %628 = vmatprep.subr.mxu0 0.0
  %629 = vmatpush1.msra.mxu0 %v247
  %630 = vmatprep.subr.mxu0 0.0
  %631 = vmatpush1.msra.mxu0 0.0
  %632 = vmatprep.subr.mxu0 0.0
  %633 = vmatpush1.msra.mxu0 0.0
  %634 = vmatprep.subr.mxu0 0.0
  %635 = vmatpush1.msra.mxu0 0.0
  %636 = vmatprep.subr.mxu0 0.0
  %637 = vmatpush1.msra.mxu0 0.0
  %638 = vmatprep.subr.mxu0 0.0
  %639 = vmatpush1.msra.mxu0 0.0
  %640 = vmatprep.subr.mxu0 0.0
  %641 = vmatpush1.msra.mxu0 0.0
  %642 = vmatprep.subr.mxu0 0.0
  %643 = vmatpush1.msra.mxu0 0.0
  %644 = vmatprep.subr.mxu0 0.0
  %645 = vmatpush1.msra.mxu0 0.0
  %646 = vmatprep.subr.mxu0 0.0
  %647 = vmatpush1.msra.mxu0 0.0
  %648 = vmatprep.subr.mxu0 0.0
  %649 = vmatpush1.msra.mxu0 0.0
  %650 = vmatprep.subr.mxu0 0.0
  %651 = vmatpush1.msra.mxu0 0.0
  %652 = vmatprep.subr.mxu0 0.0
  %653 = vmatpush1.msra.mxu0 0.0
  %654 = vmatprep.subr.mxu0 0.0
  %655 = vmatpush1.msra.mxu0 0.0
  %656 = vmatprep.subr.mxu0 0.0
  %657 = vmatpush1.msra.mxu0 0.0
  %658 = vmatprep.subr.mxu0 0.0
  %659 = vmatpush1.msra.mxu0 0.0
  %660 = vmatprep.subr.mxu0 0.0
  %661 = vmatpush1.msra.mxu0 0.0
  %662 = vmatprep.subr.mxu0 0.0
  %663 = vmatpush1.msra.mxu0 0.0
  %664 = vmatprep.subr.mxu0 0.0
  %665 = vmatpush1.msra.mxu0 0.0
  %666 = vmatprep.subr.mxu0 0.0
  %667 = vmatpush1.msra.mxu0 0.0
  %668 = vmatprep.subr.mxu0 0.0
  %669 = vmatpush1.msra.mxu0 0.0
  %670 = vmatprep.subr.mxu0 0.0
  %671 = vmatpush1.msra.mxu0 0.0
  %672 = vmatprep.subr.mxu0 0.0
  %673 = vmatpush1.msra.mxu0 0.0
  %674 = vmatprep.subr.mxu0 0.0
  %675 = vmatpush1.msra.mxu0 0.0
  %676 = vmatprep.subr.mxu0 0.0
  %677 = vmatpush1.msra.mxu0 0.0
  %678 = vmatprep.subr.mxu0 0.0
  %679 = vmatpush1.msra.mxu0 0.0
  %680 = vmatprep.subr.mxu0 0.0
  %681 = vmatpush1.msra.mxu0 0.0
  %682 = vmatprep.subr.mxu0 0.0
  %683 = vmatpush1.msra.mxu0 0.0
  %684 = vmatprep.subr.mxu0 0.0
  %685 = vmatpush1.msra.mxu0 0.0
  %686 = vmatprep.subr.mxu0 0.0
  %687 = vmatpush1.msra.mxu0 0.0
  %688 = vmatprep.mubr.f32.mxu0 0.0
  %689 = vmatmul.mubr.f32.gmra.mrb[0].mxu0 %v622
  %v690 = vpop.f32.mrb[0].mxu0
  %v691 = vadd.f32 0.0, %v690
  %v692 = vpop.f32.mrb[0].mxu0
  %693 = vdwg.mxu0
  %v694 = vadd.f32 %v235, %v691
  %v695 = vtanh.pop %v694
  %v696 = vld [vmem:[%s2 + $0x20] sm:$0xff]
  %v697 = vld [vmem:[%s2 + $0x28] sm:$0xff]
  %v698 = vld [vmem:[%s2 + $0x30] sm:$0xf]
  %v700 = vsel %vm242, %v695, 0
  %v703 = vsel %vm139, %v698, 0
  %705 = vmatprep.subr.mxu0 0.0
  %706 = vmatpush1.msra.mxu0 %v696
  %707 = vmatprep.subr.mxu0 0.0
  %708 = vmatpush1.msra.mxu0 %v697
  %709 = vmatprep.subr.mxu0 0.0
  %710 = vmatpush1.msra.mxu0 %v703
  %711 = vmatprep.subr.mxu0 0.0
  %712 = vmatpush1.msra.mxu0 0.0
  %713 = vmatprep.subr.mxu0 0.0
  %714 = vmatpush1.msra.mxu0 0.0
  %715 = vmatprep.subr.mxu0 0.0
  %716 = vmatpush1.msra.mxu0 0.0
  %717 = vmatprep.subr.mxu0 0.0
  %718 = vmatpush1.msra.mxu0 0.0
  %719 = vmatprep.subr.mxu0 0.0
  %720 = vmatpush1.msra.mxu0 0.0
  %721 = vmatprep.subr.mxu0 0.0
  %722 = vmatpush1.msra.mxu0 0.0
  %723 = vmatprep.subr.mxu0 0.0
  %724 = vmatpush1.msra.mxu0 0.0
  %725 = vmatprep.subr.mxu0 0.0
  %726 = vmatpush1.msra.mxu0 0.0
  %727 = vmatprep.subr.mxu0 0.0
  %728 = vmatpush1.msra.mxu0 0.0
  %729 = vmatprep.subr.mxu0 0.0
  %730 = vmatpush1.msra.mxu0 0.0
  %731 = vmatprep.subr.mxu0 0.0
  %732 = vmatpush1.msra.mxu0 0.0
  %733 = vmatprep.subr.mxu0 0.0
  %734 = vmatpush1.msra.mxu0 0.0
  %735 = vmatprep.subr.mxu0 0.0
  %736 = vmatpush1.msra.mxu0 0.0
  %737 = vmatprep.subr.mxu0 0.0
  %738 = vmatpush1.msra.mxu0 0.0
  %739 = vmatprep.subr.mxu0 0.0
  %740 = vmatpush1.msra.mxu0 0.0
  %741 = vmatprep.subr.mxu0 0.0
  %742 = vmatpush1.msra.mxu0 0.0
  %743 = vmatprep.subr.mxu0 0.0
  %744 = vmatpush1.msra.mxu0 0.0
  %745 = vmatprep.subr.mxu0 0.0
  %746 = vmatpush1.msra.mxu0 0.0
  %747 = vmatprep.subr.mxu0 0.0
  %748 = vmatpush1.msra.mxu0 0.0
  %749 = vmatprep.subr.mxu0 0.0
  %750 = vmatpush1.msra.mxu0 0.0
  %751 = vmatprep.subr.mxu0 0.0
  %752 = vmatpush1.msra.mxu0 0.0
  %753 = vmatprep.subr.mxu0 0.0
  %754 = vmatpush1.msra.mxu0 0.0
  %755 = vmatprep.subr.mxu0 0.0
  %756 = vmatpush1.msra.mxu0 0.0
  %757 = vmatprep.subr.mxu0 0.0
  %758 = vmatpush1.msra.mxu0 0.0
  %759 = vmatprep.subr.mxu0 0.0
  %760 = vmatpush1.msra.mxu0 0.0
  %761 = vmatprep.subr.mxu0 0.0
  %762 = vmatpush1.msra.mxu0 0.0
  %763 = vmatprep.subr.mxu0 0.0
  %764 = vmatpush1.msra.mxu0 0.0
  %765 = vmatprep.subr.mxu0 0.0
  %766 = vmatpush1.msra.mxu0 0.0
  %767 = vmatprep.subr.mxu0 0.0
  %768 = vmatpush1.msra.mxu0 0.0
  %769 = vmatprep.mubr.f32.mxu0 0.0
  %770 = vmatmul.mubr.f32.gmra.mrb[0].mxu0 %v700
  %v771 = vpop.f32.mrb[0].mxu0
  %v772 = vadd.f32 0.0, %v771
  %v773 = vpop.f32.mrb[0].mxu0
  %774 = vdwg.mxu0
  %v775 = vld [vmem:[%s2 + $0x38] sm:$0xff]
  %v776 = vld [vmem:[%s2 + $0x40] sm:$0xff]
  %v777 = vld [vmem:[%s2 + $0x48] sm:$0xf]
  %v778 = vld [vmem:[%s2 + $0x50] sm:$0x1]
  %v779 = vmax.f32 %v772, 0.0
  %v780 = vlaneseq
  %v781 = vshrl.u32 %v780, 7
  %v782 = vsub.s32 0, %v781
  %v783 = vrot.slane %v778, %v782
  %v785 = vsel %vm242, %v779, 0
  %v788 = vsel %vm139, %v777, 0
  %790 = vmatprep.subr.mxu0 0.0
  %791 = vmatpush1.msra.mxu0 %v775
  %792 = vmatprep.subr.mxu0 0.0
  %793 = vmatpush1.msra.mxu0 %v776
  %794 = vmatprep.subr.mxu0 0.0
  %795 = vmatpush1.msra.mxu0 %v788
  %796 = vmatprep.subr.mxu0 0.0
  %797 = vmatpush1.msra.mxu0 0.0
  %798 = vmatprep.subr.mxu0 0.0
  %799 = vmatpush1.msra.mxu0 0.0
  %800 = vmatprep.subr.mxu0 0.0
  %801 = vmatpush1.msra.mxu0 0.0
  %802 = vmatprep.subr.mxu0 0.0
  %803 = vmatpush1.msra.mxu0 0.0
  %804 = vmatprep.subr.mxu0 0.0
  %805 = vmatpush1.msra.mxu0 0.0
  %806 = vmatprep.subr.mxu0 0.0
  %807 = vmatpush1.msra.mxu0 0.0
  %808 = vmatprep.subr.mxu0 0.0
  %809 = vmatpush1.msra.mxu0 0.0
  %810 = vmatprep.subr.mxu0 0.0
  %811 = vmatpush1.msra.mxu0 0.0
  %812 = vmatprep.subr.mxu0 0.0
  %813 = vmatpush1.msra.mxu0 0.0
  %814 = vmatprep.subr.mxu0 0.0
  %815 = vmatpush1.msra.mxu0 0.0
  %816 = vmatprep.subr.mxu0 0.0
  %817 = vmatpush1.msra.mxu0 0.0
  %818 = vmatprep.subr.mxu0 0.0
  %819 = vmatpush1.msra.mxu0 0.0
  %820 = vmatprep.subr.mxu0 0.0
  %821 = vmatpush1.msra.mxu0 0.0
  %822 = vmatprep.subr.mxu0 0.0
  %823 = vmatpush1.msra.mxu0 0.0
  %824 = vmatprep.subr.mxu0 0.0
  %825 = vmatpush1.msra.mxu0 0.0
  %826 = vmatprep.subr.mxu0 0.0
  %827 = vmatpush1.msra.mxu0 0.0
  %828 = vmatprep.subr.mxu0 0.0
  %829 = vmatpush1.msra.mxu0 0.0
  %830 = vmatprep.subr.mxu0 0.0
  %831 = vmatpush1.msra.mxu0 0.0
  %832 = vmatprep.subr.mxu0 0.0
  %833 = vmatpush1.msra.mxu0 0.0
  %834 = vmatprep.subr.mxu0 0.0
  %835 = vmatpush1.msra.mxu0 0.0
  %836 = vmatprep.subr.mxu0 0.0
  %837 = vmatpush1.msra.mxu0 0.0
  %838 = vmatprep.subr.mxu0 0.0
  %839 = vmatpush1.msra.mxu0 0.0
  %840 = vmatprep.subr.mxu0 0.0
  %841 = vmatpush1.msra.mxu0 0.0
  %842 = vmatprep.subr.mxu0 0.0
  %843 = vmatpush1.msra.mxu0 0.0
  %844 = vmatprep.subr.mxu0 0.0
  %845 = vmatpush1.msra.mxu0 0.0
  %846 = vmatprep.subr.mxu0 0.0
  %847 = vmatpush1.msra.mxu0 0.0
  %848 = vmatprep.subr.mxu0 0.0
  %849 = vmatpush1.msra.mxu0 0.0
  %850 = vmatprep.subr.mxu0 0.0
  %851 = vmatpush1.msra.mxu0 0.0
  %852 = vmatprep.subr.mxu0 0.0
  %853 = vmatpush1.msra.mxu0 0.0
  %854 = vmatprep.mubr.f32.mxu0 0.0
  %855 = vmatmul.mubr.f32.gmra.mrb[0].mxu0 %v785
  %v856 = vpop.f32.mrb[0].mxu0
  %v857 = vadd.f32 %v783, %v856
  %v858 = vpop.f32.mrb[0].mxu0
  %859 = vdwg.mxu0
  %vm860 = vcmask 15360
  %861 = vst.msk [vmem:[%s3] sm:$0xff] %vm860, %v857
  %862 = vst.msk [vmem:[%s4] sm:$0xff] %vm242, %v772
  // Predicated region
  $region14: #{forward.1} parent=0 // pred_check
    _
  $region15: #{forward.1} parent=0 // pred_check_branch
    %864 = sbr.rel (0) target = $region17
  $region16: #{forward.1} parent=0 // pred_region
    _
  $region17: #{forward.1} parent=0 // pred_fallthru
    _
  // Predicated region
  $region18: #{forward.1} parent=0 // pred_check
    _
  $region19: #{forward.1} parent=0 // pred_check_branch
    %866 = sbr.rel (0) target = $region21
  $region20: #{forward.1} parent=0 // pred_region
    _
  $region21: #{forward.1} parent=0 // pred_fallthru
    _
  // Predicated region
  $region22: #{forward.1} parent=0 // pred_check
    _
  $region23: #{forward.1} parent=0 // pred_check_branch
    %868 = sbr.rel (0) target = $region25
  $region24: #{forward.1} parent=0 // pred_region
    _
  $region25: #{forward.1} parent=0 // pred_fallthru
    _
  // Predicated region
  $region26: #{forward.1} parent=0 // pred_check
    _
  $region27: #{forward.1} parent=0 // pred_check_branch
    %870 = sbr.rel (0) target = $region29
  $region28: #{forward.1} parent=0 // pred_region
    _
  $region29: #{forward.1} parent=0 // pred_fallthru
    _

</llo_original>
